<compile_context>
chip_gen: v6e
topology: v6e:2x2x1
jax: 0.10.0
libtpu: 0.0.40
codegen_flags: <defaults>
</compile_context>

<pallas_src>
import functools

import jax
import jax.numpy as jnp
from jax.experimental import pallas as pl
from jax.experimental.pallas import tpu as pltpu


STATE_WIDTH = 128  # one lane group: x, y and the ldj output lane all fit here


# -----------------------------------------------------------------------------
# Fused kernel: whole forward (all layers) in one invocation, no grid.
# -----------------------------------------------------------------------------
def _cinn_kernel(state_ref, w1_ref, b1_ref, w2_ref, b2_ref, w3_ref, b3_ref,
                 out_ref):
    P = state_ref.shape[1]          # 128
    L = w1_ref.shape[0]             # num coupling layers (static)

    w = state_ref[...]              # (B, P): lanes [0,D)=x, [D,D+C)=y, rest 0
    ldj_acc = jnp.zeros_like(w)     # lane-dense ldj accumulator

    # Entire layer chain unrolled (L is a small compile-time constant).
    for l in range(L):
        # Level 1: one matmul; x1-selection + flip + y-concat folded into rows.
        h = jnp.dot(w, w1_ref[l], preferred_element_type=jnp.float32) + b1_ref[l]
        h = jnp.maximum(h, 0.0)                                   # ReLU

        # Level 2: block-diagonal fused [2H, 2H] (scale/translate don't mix).
        h = jnp.dot(h, w2_ref[l], preferred_element_type=jnp.float32) + b2_ref[l]
        h = jnp.maximum(h, 0.0)                                   # ReLU

        # Level 3: one matmul; s head in lanes [0,P), t head in lanes [P,2P),
        # columns flip-permuted onto the state lanes they update.
        st = jnp.dot(h, w3_ref[l], preferred_element_type=jnp.float32) + b3_ref[l]
        s = jnp.tanh(st[:, :P])     # zero at non-x2 lanes -> exp(s)=1 there
        t = st[:, P:]               # zero at non-x2 lanes

        # Affine update of the x2 lanes; x1 / y / padding lanes pass through.
        w = w * jnp.exp(s) + t
        ldj_acc = ldj_acc + s

    # Single lane-dense output: state in lanes [0,D), scalar ldj in lane P-1.
    ldj = jnp.sum(ldj_acc, axis=1, keepdims=True)                 # (B, 1)
    lane = jax.lax.broadcasted_iota(jnp.int32, w.shape, 1)
    out_ref[...] = jnp.where(lane == P - 1, ldj, w)


# -----------------------------------------------------------------------------
# Wrapper: one pallas_call, everything resident in VMEM.
# -----------------------------------------------------------------------------
def cinn_forward(x, y, fused):
    B, D = x.shape
    C = y.shape[1]
    P = STATE_WIDTH
    L = fused["w1"].shape[0]
    assert D + C <= P - 1, "state + condition + ldj lane must fit in 128 lanes"

    # Build the padded state slab once (tiny XLA op outside the kernel).
    state0 = jnp.zeros((B, P), jnp.float32)
    state0 = state0.at[:, :D].set(x.astype(jnp.float32))
    state0 = state0.at[:, D:D + C].set(y.astype(jnp.float32))

    vmem = pl.BlockSpec(memory_space=pltpu.MemorySpace.VMEM)
    out = pl.pallas_call(
        _cinn_kernel,
        out_shape=jax.ShapeDtypeStruct((B, P), jnp.float32),
        in_specs=[vmem] * 7,
        out_specs=vmem,
    )(state0, fused["w1"], fused["b1"], fused["w2"], fused["b2"],
      fused["w3"], fused["b3"])

    zw = out[:, :D]
    # The kernel state is kept in the never-flipped frame; apply the net
    # permutation (L flips) once here.
    z = zw[:, ::-1] if (L % 2 == 1) else zw
    ldj = out[:, P - 1]
    return z, ldj


# -----------------------------------------------------------------------------
# Parameter init (PyTorch nn.Linear default: U(-1/sqrt(fan_in), +1/sqrt(fan_in)))
# -----------------------------------------------------------------------------
def _init_linear(key, fan_in, fan_out):
    kw, kb = jax.random.split(key)
    bound = 1.0 / jnp.sqrt(float(fan_in))
    W = jax.random.uniform(kw, (fan_in, fan_out), jnp.float32, -bound, bound)
    b = jax.random.uniform(kb, (1, fan_out), jnp.float32, -bound, bound)
    return W, b


def init_cinn_params(key, input_dim, condition_dim, num_layers, hidden):
    half_dim = (input_dim + 1) // 2
    x2_dim = input_dim - half_dim
    in_size = half_dim + condition_dim
    raw_layers = []
    for _ in range(num_layers):
        nets = {}
        for net in ("scale", "translate"):
            ws = []
            for fi, fo in [(in_size, hidden), (hidden, hidden), (hidden, x2_dim)]:
                key, sub = jax.random.split(key)
                ws.append(_init_linear(sub, fi, fo))
            nets[net] = ws
        raw_layers.append(nets)
    return raw_layers, half_dim


# -----------------------------------------------------------------------------
# Offline weight fusion: scale|translate fused, FlipLayer folded into the
# per-layer row/column permutations, everything padded to lane-dense slabs.
# -----------------------------------------------------------------------------
def fuse_params(raw_layers, *, input_dim, condition_dim, hidden):
    D = input_dim
    h = (D + 1) // 2
    x2d = D - h
    C = condition_dim
    H = hidden
    P = STATE_WIDTH

    w1s, b1s, w2s, b2s, w3s, b3s = [], [], [], [], [], []
    for l, layer in enumerate(raw_layers):
        (sw1, sb1), (sw2, sb2), (sw3, sb3) = layer["scale"]
        (tw1, tb1), (tw2, tb2), (tw3, tb3) = layer["translate"]
        p = l % 2
        # State-slab lane holding u1[j] / u2[k] at this layer (state is kept in
        # the never-flipped frame; parity of accumulated flips = p).
        x1_lane = [j if p == 0 else D - 1 - j for j in range(h)]
        x2_lane = [h + k if p == 0 else D - 1 - h - k for k in range(x2d)]

        # Level 1: (P, 2H) — x1 rows placed at their state lanes, y rows at
        # lanes [D, D+C), everything else zero.
        W1f = jnp.concatenate([sw1, tw1], axis=1)              # (h+C, 2H)
        W1 = jnp.zeros((P, 2 * H), jnp.float32)
        for j in range(h):
            W1 = W1.at[x1_lane[j], :].set(W1f[j, :])
        W1 = W1.at[D:D + C, :].set(W1f[h:, :])
        w1s.append(W1)
        b1s.append(jnp.concatenate([sb1, tb1], axis=1))        # (1, 2H)

        # Level 2: block-diagonal (2H, 2H).
        W2 = jnp.zeros((2 * H, 2 * H), jnp.float32)
        W2 = W2.at[:H, :H].set(sw2).at[H:, H:].set(tw2)
        w2s.append(W2)
        b2s.append(jnp.concatenate([sb2, tb2], axis=1))        # (1, 2H)

        # Level 3: (2H, 2P) — s head in cols [0,P), t head in cols [P,2P),
        # each output column flip-permuted onto the state lane it updates.
        W3 = jnp.zeros((2 * H, 2 * P), jnp.float32)
        b3 = jnp.zeros((1, 2 * P), jnp.float32)
        for k in range(x2d):
            lane = x2_lane[k]
            W3 = W3.at[:H, lane].set(sw3[:, k])
            b3 = b3.at[0, lane].set(sb3[0, k])
            W3 = W3.at[H:, P + lane].set(tw3[:, k])
            b3 = b3.at[0, P + lane].set(tb3[0, k])
        w3s.append(W3)
        b3s.append(b3)

    return {
        "w1": jnp.stack(w1s), "b1": jnp.stack(b1s),
        "w2": jnp.stack(w2s), "b2": jnp.stack(b2s),
        "w3": jnp.stack(w3s), "b3": jnp.stack(b3s),
    }


# -----------------------------------------------------------------------------
# Pure-JAX reference (mirrors the PyTorch module) for validation.
# -----------------------------------------------------------------------------
def cinn_forward_ref(x, y, raw_layers, half_dim):
    ldj = jnp.zeros((x.shape[0],), jnp.float32)
    for layer in raw_layers:
        x1, x2 = x[:, :half_dim], x[:, half_dim:]
        cond = jnp.concatenate([x1, y], axis=1)
        (sw1, sb1), (sw2, sb2), (sw3, sb3) = layer["scale"]
        (tw1, tb1), (tw2, tb2), (tw3, tb3) = layer["translate"]
        h = jnp.maximum(cond @ sw1 + sb1, 0.0)
        h = jnp.maximum(h @ sw2 + sb2, 0.0)
        s = jnp.tanh(h @ sw3 + sb3)
        g = jnp.maximum(cond @ tw1 + tb1, 0.0)
        g = jnp.maximum(g @ tw2 + tb2, 0.0)
        t = g @ tw3 + tb3
        z2 = x2 * jnp.exp(s) + t
        x = jnp.concatenate([x1, z2], axis=1)
        ldj = ldj + jnp.sum(s, axis=1)
        x = x[:, ::-1]                  # FlipLayer after every coupling layer
    return x, ldj


# -----------------------------------------------------------------------------
if __name__ == "__main__":
    # Shapes consistent with the module: input_dim=7 (odd -> half_dim=4,
    # x2_dim=3), condition_dim=5, 3 coupling layers, hidden layers [32, 32],
    # scale net: ReLU/ReLU + Tanh output, translate net: ReLU/ReLU + no act.
    input_dim = 7
    condition_dim = 5
    num_layers = 3
    hidden = 32
    batch = 8

    key = jax.random.PRNGKey(0)
    kx, ky, kp = jax.random.split(key, 3)
    x = jax.random.normal(kx, (batch, input_dim), dtype=jnp.float32)
    y = jax.random.normal(ky, (batch, condition_dim), dtype=jnp.float32)

    raw_layers, half_dim = init_cinn_params(
        kp, input_dim, condition_dim, num_layers, hidden)
    fused = fuse_params(raw_layers, input_dim=input_dim,
                        condition_dim=condition_dim, hidden=hidden)

    fwd = jax.jit(cinn_forward)
    z, log_det_jacobian = fwd(x, y, fused)
    jax.block_until_ready((z, log_det_jacobian))

    z_ref, ldj_ref = cinn_forward_ref(x, y, raw_layers, half_dim)

    assert z.shape == (batch, input_dim)
    assert log_det_jacobian.shape == (batch,)
    assert jnp.allclose(z, z_ref, rtol=1e-3, atol=1e-3)
    assert jnp.allclose(log_det_jacobian, ldj_ref, rtol=1e-3, atol=1e-3)
    print("KERNEL_OK")
</pallas_src>

<mosaic_0001>
module attributes {stable_mosaic.version = 11 : i64} {
  func.func @_cinn_kernel(%arg0: memref<8x128xf32, #tpu.memory_space<vmem>>, %arg1: memref<3x128x64xf32, #tpu.memory_space<vmem>>, %arg2: memref<3x1x64xf32, #tpu.memory_space<vmem>>, %arg3: memref<3x64x64xf32, #tpu.memory_space<vmem>>, %arg4: memref<3x1x64xf32, #tpu.memory_space<vmem>>, %arg5: memref<3x64x256xf32, #tpu.memory_space<vmem>>, %arg6: memref<3x1x256xf32, #tpu.memory_space<vmem>>, %arg7: memref<8x128xf32, #tpu.memory_space<vmem>>) attributes {dimension_semantics = [], scalar_prefetch = 0 : i64, scratch_operands = 0 : i64, tpu.core_type = #tpu.core_type<tc>} {
    %c0 = arith.constant 0 : index
    %c0_0 = arith.constant 0 : index
    %0 = vector.load %arg0[%c0, %c0_0] : memref<8x128xf32, #tpu.memory_space<vmem>>, vector<8x128xf32>
    %cst = arith.constant 0.000000e+00 : f32
    %1 = vector.broadcast %cst : f32 to vector<8x128xf32>
    %c0_1 = arith.constant 0 : index
    %c0_2 = arith.constant 0 : index
    %c0_3 = arith.constant 0 : index
    %2 = vector.load %arg1[%c0_1, %c0_2, %c0_3] : memref<3x128x64xf32, #tpu.memory_space<vmem>>, vector<1x128x64xf32>
    %3 = vector.shape_cast %2 : vector<1x128x64xf32> to vector<128x64xf32>
    %cst_4 = arith.constant dense<0.000000e+00> : vector<8x64xf32>
    %4 = tpu.matmul %0, %3, %cst_4 {dimension_numbers = #tpu.dot_dimension_numbers<[1], [0], [0], [1], [0, 0, 1, 1], [], []>} : vector<8x128xf32>, vector<128x64xf32>, vector<8x64xf32> -> vector<8x64xf32>
    %c0_5 = arith.constant 0 : index
    %c0_6 = arith.constant 0 : index
    %c0_7 = arith.constant 0 : index
    %5 = vector.load %arg2[%c0_5, %c0_6, %c0_7] : memref<3x1x64xf32, #tpu.memory_space<vmem>>, vector<1x1x64xf32>
    %6 = vector.shape_cast %5 : vector<1x1x64xf32> to vector<1x64xf32>
    %7 = vector.broadcast %6 : vector<1x64xf32> to vector<8x64xf32>
    %8 = arith.addf %4, %7 : vector<8x64xf32>
    %cst_8 = arith.constant 0.000000e+00 : f32
    %9 = vector.broadcast %cst_8 : f32 to vector<8x64xf32>
    %10 = arith.maximumf %8, %9 : vector<8x64xf32>
    %c0_9 = arith.constant 0 : index
    %c0_10 = arith.constant 0 : index
    %c0_11 = arith.constant 0 : index
    %11 = vector.load %arg3[%c0_9, %c0_10, %c0_11] : memref<3x64x64xf32, #tpu.memory_space<vmem>>, vector<1x64x64xf32>
    %12 = vector.shape_cast %11 : vector<1x64x64xf32> to vector<64x64xf32>
    %cst_12 = arith.constant dense<0.000000e+00> : vector<8x64xf32>
    %13 = tpu.matmul %10, %12, %cst_12 {dimension_numbers = #tpu.dot_dimension_numbers<[1], [0], [0], [1], [0, 0, 1, 1], [], []>} : vector<8x64xf32>, vector<64x64xf32>, vector<8x64xf32> -> vector<8x64xf32>
    %c0_13 = arith.constant 0 : index
    %c0_14 = arith.constant 0 : index
    %c0_15 = arith.constant 0 : index
    %14 = vector.load %arg4[%c0_13, %c0_14, %c0_15] : memref<3x1x64xf32, #tpu.memory_space<vmem>>, vector<1x1x64xf32>
    %15 = vector.shape_cast %14 : vector<1x1x64xf32> to vector<1x64xf32>
    %16 = vector.broadcast %15 : vector<1x64xf32> to vector<8x64xf32>
    %17 = arith.addf %13, %16 : vector<8x64xf32>
    %cst_16 = arith.constant 0.000000e+00 : f32
    %18 = vector.broadcast %cst_16 : f32 to vector<8x64xf32>
    %19 = arith.maximumf %17, %18 : vector<8x64xf32>
    %c0_17 = arith.constant 0 : index
    %c0_18 = arith.constant 0 : index
    %c0_19 = arith.constant 0 : index
    %20 = vector.load %arg5[%c0_17, %c0_18, %c0_19] : memref<3x64x256xf32, #tpu.memory_space<vmem>>, vector<1x64x256xf32>
    %21 = vector.shape_cast %20 : vector<1x64x256xf32> to vector<64x256xf32>
    %cst_20 = arith.constant dense<0.000000e+00> : vector<8x256xf32>
    %22 = tpu.matmul %19, %21, %cst_20 {dimension_numbers = #tpu.dot_dimension_numbers<[1], [0], [0], [1], [0, 0, 1, 1], [], []>} : vector<8x64xf32>, vector<64x256xf32>, vector<8x256xf32> -> vector<8x256xf32>
    %c0_21 = arith.constant 0 : index
    %c0_22 = arith.constant 0 : index
    %c0_23 = arith.constant 0 : index
    %23 = vector.load %arg6[%c0_21, %c0_22, %c0_23] : memref<3x1x256xf32, #tpu.memory_space<vmem>>, vector<1x1x256xf32>
    %24 = vector.shape_cast %23 : vector<1x1x256xf32> to vector<1x256xf32>
    %25 = vector.broadcast %24 : vector<1x256xf32> to vector<8x256xf32>
    %26 = arith.addf %22, %25 : vector<8x256xf32>
    %27 = vector.extract_strided_slice %26 {offsets = [0, 0], sizes = [8, 128], strides = [1, 1]} : vector<8x256xf32> to vector<8x128xf32>
    %28 = math.tanh %27 : vector<8x128xf32>
    %29 = vector.extract_strided_slice %26 {offsets = [0, 128], sizes = [8, 128], strides = [1, 1]} : vector<8x256xf32> to vector<8x128xf32>
    %30 = math.exp %28 : vector<8x128xf32>
    %31 = arith.mulf %0, %30 : vector<8x128xf32>
    %32 = arith.addf %31, %29 : vector<8x128xf32>
    %33 = arith.addf %1, %28 : vector<8x128xf32>
    %c1 = arith.constant 1 : index
    %c0_24 = arith.constant 0 : index
    %c0_25 = arith.constant 0 : index
    %34 = vector.load %arg1[%c1, %c0_24, %c0_25] : memref<3x128x64xf32, #tpu.memory_space<vmem>>, vector<1x128x64xf32>
    %35 = vector.shape_cast %34 : vector<1x128x64xf32> to vector<128x64xf32>
    %cst_26 = arith.constant dense<0.000000e+00> : vector<8x64xf32>
    %36 = tpu.matmul %32, %35, %cst_26 {dimension_numbers = #tpu.dot_dimension_numbers<[1], [0], [0], [1], [0, 0, 1, 1], [], []>} : vector<8x128xf32>, vector<128x64xf32>, vector<8x64xf32> -> vector<8x64xf32>
    %c1_27 = arith.constant 1 : index
    %c0_28 = arith.constant 0 : index
    %c0_29 = arith.constant 0 : index
    %37 = vector.load %arg2[%c1_27, %c0_28, %c0_29] : memref<3x1x64xf32, #tpu.memory_space<vmem>>, vector<1x1x64xf32>
    %38 = vector.shape_cast %37 : vector<1x1x64xf32> to vector<1x64xf32>
    %39 = vector.broadcast %38 : vector<1x64xf32> to vector<8x64xf32>
    %40 = arith.addf %36, %39 : vector<8x64xf32>
    %cst_30 = arith.constant 0.000000e+00 : f32
    %41 = vector.broadcast %cst_30 : f32 to vector<8x64xf32>
    %42 = arith.maximumf %40, %41 : vector<8x64xf32>
    %c1_31 = arith.constant 1 : index
    %c0_32 = arith.constant 0 : index
    %c0_33 = arith.constant 0 : index
    %43 = vector.load %arg3[%c1_31, %c0_32, %c0_33] : memref<3x64x64xf32, #tpu.memory_space<vmem>>, vector<1x64x64xf32>
    %44 = vector.shape_cast %43 : vector<1x64x64xf32> to vector<64x64xf32>
    %cst_34 = arith.constant dense<0.000000e+00> : vector<8x64xf32>
    %45 = tpu.matmul %42, %44, %cst_34 {dimension_numbers = #tpu.dot_dimension_numbers<[1], [0], [0], [1], [0, 0, 1, 1], [], []>} : vector<8x64xf32>, vector<64x64xf32>, vector<8x64xf32> -> vector<8x64xf32>
    %c1_35 = arith.constant 1 : index
    %c0_36 = arith.constant 0 : index
    %c0_37 = arith.constant 0 : index
    %46 = vector.load %arg4[%c1_35, %c0_36, %c0_37] : memref<3x1x64xf32, #tpu.memory_space<vmem>>, vector<1x1x64xf32>
    %47 = vector.shape_cast %46 : vector<1x1x64xf32> to vector<1x64xf32>
    %48 = vector.broadcast %47 : vector<1x64xf32> to vector<8x64xf32>
    %49 = arith.addf %45, %48 : vector<8x64xf32>
    %cst_38 = arith.constant 0.000000e+00 : f32
    %50 = vector.broadcast %cst_38 : f32 to vector<8x64xf32>
    %51 = arith.maximumf %49, %50 : vector<8x64xf32>
    %c1_39 = arith.constant 1 : index
    %c0_40 = arith.constant 0 : index
    %c0_41 = arith.constant 0 : index
    %52 = vector.load %arg5[%c1_39, %c0_40, %c0_41] : memref<3x64x256xf32, #tpu.memory_space<vmem>>, vector<1x64x256xf32>
    %53 = vector.shape_cast %52 : vector<1x64x256xf32> to vector<64x256xf32>
    %cst_42 = arith.constant dense<0.000000e+00> : vector<8x256xf32>
    %54 = tpu.matmul %51, %53, %cst_42 {dimension_numbers = #tpu.dot_dimension_numbers<[1], [0], [0], [1], [0, 0, 1, 1], [], []>} : vector<8x64xf32>, vector<64x256xf32>, vector<8x256xf32> -> vector<8x256xf32>
    %c1_43 = arith.constant 1 : index
    %c0_44 = arith.constant 0 : index
    %c0_45 = arith.constant 0 : index
    %55 = vector.load %arg6[%c1_43, %c0_44, %c0_45] : memref<3x1x256xf32, #tpu.memory_space<vmem>>, vector<1x1x256xf32>
    %56 = vector.shape_cast %55 : vector<1x1x256xf32> to vector<1x256xf32>
    %57 = vector.broadcast %56 : vector<1x256xf32> to vector<8x256xf32>
    %58 = arith.addf %54, %57 : vector<8x256xf32>
    %59 = vector.extract_strided_slice %58 {offsets = [0, 0], sizes = [8, 128], strides = [1, 1]} : vector<8x256xf32> to vector<8x128xf32>
    %60 = math.tanh %59 : vector<8x128xf32>
    %61 = vector.extract_strided_slice %58 {offsets = [0, 128], sizes = [8, 128], strides = [1, 1]} : vector<8x256xf32> to vector<8x128xf32>
    %62 = math.exp %60 : vector<8x128xf32>
    %63 = arith.mulf %32, %62 : vector<8x128xf32>
    %64 = arith.addf %63, %61 : vector<8x128xf32>
    %65 = arith.addf %33, %60 : vector<8x128xf32>
    %c2 = arith.constant 2 : index
    %c0_46 = arith.constant 0 : index
    %c0_47 = arith.constant 0 : index
    %66 = vector.load %arg1[%c2, %c0_46, %c0_47] : memref<3x128x64xf32, #tpu.memory_space<vmem>>, vector<1x128x64xf32>
    %67 = vector.shape_cast %66 : vector<1x128x64xf32> to vector<128x64xf32>
    %cst_48 = arith.constant dense<0.000000e+00> : vector<8x64xf32>
    %68 = tpu.matmul %64, %67, %cst_48 {dimension_numbers = #tpu.dot_dimension_numbers<[1], [0], [0], [1], [0, 0, 1, 1], [], []>} : vector<8x128xf32>, vector<128x64xf32>, vector<8x64xf32> -> vector<8x64xf32>
    %c2_49 = arith.constant 2 : index
    %c0_50 = arith.constant 0 : index
    %c0_51 = arith.constant 0 : index
    %69 = vector.load %arg2[%c2_49, %c0_50, %c0_51] : memref<3x1x64xf32, #tpu.memory_space<vmem>>, vector<1x1x64xf32>
    %70 = vector.shape_cast %69 : vector<1x1x64xf32> to vector<1x64xf32>
    %71 = vector.broadcast %70 : vector<1x64xf32> to vector<8x64xf32>
    %72 = arith.addf %68, %71 : vector<8x64xf32>
    %cst_52 = arith.constant 0.000000e+00 : f32
    %73 = vector.broadcast %cst_52 : f32 to vector<8x64xf32>
    %74 = arith.maximumf %72, %73 : vector<8x64xf32>
    %c2_53 = arith.constant 2 : index
    %c0_54 = arith.constant 0 : index
    %c0_55 = arith.constant 0 : index
    %75 = vector.load %arg3[%c2_53, %c0_54, %c0_55] : memref<3x64x64xf32, #tpu.memory_space<vmem>>, vector<1x64x64xf32>
    %76 = vector.shape_cast %75 : vector<1x64x64xf32> to vector<64x64xf32>
    %cst_56 = arith.constant dense<0.000000e+00> : vector<8x64xf32>
    %77 = tpu.matmul %74, %76, %cst_56 {dimension_numbers = #tpu.dot_dimension_numbers<[1], [0], [0], [1], [0, 0, 1, 1], [], []>} : vector<8x64xf32>, vector<64x64xf32>, vector<8x64xf32> -> vector<8x64xf32>
    %c2_57 = arith.constant 2 : index
    %c0_58 = arith.constant 0 : index
    %c0_59 = arith.constant 0 : index
    %78 = vector.load %arg4[%c2_57, %c0_58, %c0_59] : memref<3x1x64xf32, #tpu.memory_space<vmem>>, vector<1x1x64xf32>
    %79 = vector.shape_cast %78 : vector<1x1x64xf32> to vector<1x64xf32>
    %80 = vector.broadcast %79 : vector<1x64xf32> to vector<8x64xf32>
    %81 = arith.addf %77, %80 : vector<8x64xf32>
    %cst_60 = arith.constant 0.000000e+00 : f32
    %82 = vector.broadcast %cst_60 : f32 to vector<8x64xf32>
    %83 = arith.maximumf %81, %82 : vector<8x64xf32>
    %c2_61 = arith.constant 2 : index
    %c0_62 = arith.constant 0 : index
    %c0_63 = arith.constant 0 : index
    %84 = vector.load %arg5[%c2_61, %c0_62, %c0_63] : memref<3x64x256xf32, #tpu.memory_space<vmem>>, vector<1x64x256xf32>
    %85 = vector.shape_cast %84 : vector<1x64x256xf32> to vector<64x256xf32>
    %cst_64 = arith.constant dense<0.000000e+00> : vector<8x256xf32>
    %86 = tpu.matmul %83, %85, %cst_64 {dimension_numbers = #tpu.dot_dimension_numbers<[1], [0], [0], [1], [0, 0, 1, 1], [], []>} : vector<8x64xf32>, vector<64x256xf32>, vector<8x256xf32> -> vector<8x256xf32>
    %c2_65 = arith.constant 2 : index
    %c0_66 = arith.constant 0 : index
    %c0_67 = arith.constant 0 : index
    %87 = vector.load %arg6[%c2_65, %c0_66, %c0_67] : memref<3x1x256xf32, #tpu.memory_space<vmem>>, vector<1x1x256xf32>
    %88 = vector.shape_cast %87 : vector<1x1x256xf32> to vector<1x256xf32>
    %89 = vector.broadcast %88 : vector<1x256xf32> to vector<8x256xf32>
    %90 = arith.addf %86, %89 : vector<8x256xf32>
    %91 = vector.extract_strided_slice %90 {offsets = [0, 0], sizes = [8, 128], strides = [1, 1]} : vector<8x256xf32> to vector<8x128xf32>
    %92 = math.tanh %91 : vector<8x128xf32>
    %93 = vector.extract_strided_slice %90 {offsets = [0, 128], sizes = [8, 128], strides = [1, 1]} : vector<8x256xf32> to vector<8x128xf32>
    %94 = math.exp %92 : vector<8x128xf32>
    %95 = arith.mulf %64, %94 : vector<8x128xf32>
    %96 = arith.addf %95, %93 : vector<8x128xf32>
    %97 = arith.addf %65, %92 : vector<8x128xf32>
    %cst_68 = arith.constant dense<0.000000e+00> : vector<8xf32>
    %98 = vector.multi_reduction <add>, %97, %cst_68 [1] : vector<8x128xf32> to vector<8xf32>
    %99 = vector.shape_cast %98 : vector<8xf32> to vector<8x1xf32>
    %100 = tpu.iota {dimensions = array<i32: 1>} : vector<8x128xi32>
    %c127_i32 = arith.constant 127 : i32
    %101 = vector.broadcast %c127_i32 : i32 to vector<8x128xi32>
    %102 = arith.cmpi eq, %100, %101 : vector<8x128xi32>
    %103 = vector.shape_cast %99 : vector<8x1xf32> to vector<8x1xf32>
    %104 = vector.broadcast %103 : vector<8x1xf32> to vector<8x128xf32>
    %105 = arith.select %102, %104, %96 : vector<8x128xi1>, vector<8x128xf32>
    %c0_69 = arith.constant 0 : index
    %c0_70 = arith.constant 0 : index
    %106 = vector.load %arg7[%c0_69, %c0_70] : memref<8x128xf32, #tpu.memory_space<vmem>>, vector<8x128xf32>
    tpu.vector_store %arg7[%c0_69, %c0_70], %105 {strides = array<i32>} : memref<8x128xf32, #tpu.memory_space<vmem>>, vector<8x128xf32>,
    return
  }
}

</mosaic_0001>

<llo_original>
// kernel: cinn_forward.1
$region0: #{cinn_forward.1}
  #allocation0 [shape = 'u32[]', space=smem, size = 0x4, offset = 0x4, fixed_abs, tag = 'smem constant byte address 0x4 - core index']
  #allocation1 [shape = 'u32[144,128]{1,0:T(1,128)}', space=vmem, size = 0x12000, scoped, tag = 'internal scratch']
  %s0 = inlined_call_operand.vmem [shape: f32[8,128], index: 0, kind: input, shape index: {}]
  %s1 = inlined_call_operand.vmem [shape: f32[3,128,64], index: 1, kind: input, shape index: {}]
  %s2 = inlined_call_operand.vmem [shape: f32[3,1,64], index: 2, kind: input, shape index: {}]
  %s3 = inlined_call_operand.vmem [shape: f32[3,64,64], index: 3, kind: input, shape index: {}]
  %s4 = inlined_call_operand.vmem [shape: f32[3,1,64], index: 4, kind: input, shape index: {}]
  %s5 = inlined_call_operand.vmem [shape: f32[3,64,256], index: 5, kind: input, shape index: {}]
  %s6 = inlined_call_operand.vmem [shape: f32[3,1,256], index: 6, kind: input, shape index: {}]
  %s7 = inlined_call_operand.vmem [shape: f32[8,128], index: 7, kind: output, shape index: {}]
  %s8 = sld [smem:[#allocation0]]
  $region38: #{cinn_forward.1} parent=0
    _
  %s10 = ssub.s32 1, %s8
  %s11 = scalar_select 0, %s10, %s8
  // Predicated region
  $region2: #{cinn_forward.1} parent=0 // pred_check
    _
  $region3: #{cinn_forward.1} parent=0 // pred_check_branch
    %13 = sbr.rel (0) target = $region5
  $region4: #{cinn_forward.1} parent=0 // pred_region
    _
  $region5: #{cinn_forward.1} parent=0 // pred_fallthru
    _
  // Predicated region
  $region6: #{cinn_forward.1} parent=0 // pred_check
    _
  $region7: #{cinn_forward.1} parent=0 // pred_check_branch
    %15 = sbr.rel (0) target = $region9
  $region8: #{cinn_forward.1} parent=0 // pred_region
    _
  $region9: #{cinn_forward.1} parent=0 // pred_fallthru
    _
  // Predicated region
  $region10: #{cinn_forward.1} parent=0 // pred_check
    _
  $region11: #{cinn_forward.1} parent=0 // pred_check_branch
    %17 = sbr.rel (0) target = $region13
  $region12: #{cinn_forward.1} parent=0 // pred_region
    _
  $region13: #{cinn_forward.1} parent=0 // pred_fallthru
    _
  // Predicated region
  $region14: #{cinn_forward.1} parent=0 // pred_check
    _
  $region15: #{cinn_forward.1} parent=0 // pred_check_branch
    %19 = sbr.rel (0) target = $region17
  $region16: #{cinn_forward.1} parent=0 // pred_region
    _
  $region17: #{cinn_forward.1} parent=0 // pred_fallthru
    _
  // Predicated region
  $region18: #{cinn_forward.1} parent=0 // pred_check
    _
  $region19: #{cinn_forward.1} parent=0 // pred_check_branch
    %21 = sbr.rel (0) target = $region21
  $region20: #{cinn_forward.1} parent=0 // pred_region
    _
  $region21: #{cinn_forward.1} parent=0 // pred_fallthru
    _
  // Predicated region
  $region22: #{cinn_forward.1} parent=0 // pred_check
    _
  $region23: #{cinn_forward.1} parent=0 // pred_check_branch
    %23 = sbr.rel (0) target = $region25
  $region24: #{cinn_forward.1} parent=0 // pred_region
    _
  $region25: #{cinn_forward.1} parent=0 // pred_fallthru
    _
  // Predicated region
  $region26: #{cinn_forward.1} parent=0 // pred_check
    _
  $region27: #{cinn_forward.1} parent=0 // pred_check_branch
    %25 = sbr.rel (0) target = $region29
  $region28: #{cinn_forward.1} parent=0 // pred_region
    _
  $region29: #{cinn_forward.1} parent=0 // pred_fallthru
    _
  %v26 = vld [vmem:[%s0] sm:$0xff]
  %v27 = vld [vmem:[%s1] sm:$0xff]
  %v28 = vld [vmem:[%s1 + $0x8] sm:$0xff]
  %v29 = vld [vmem:[%s1 + $0x10] sm:$0xff]
  %v30 = vld [vmem:[%s1 + $0x18] sm:$0xff]
  %v31 = vld [vmem:[%s1 + $0x20] sm:$0xff]
  %v32 = vld [vmem:[%s1 + $0x28] sm:$0xff]
  %v33 = vld [vmem:[%s1 + $0x30] sm:$0xff]
  %v34 = vld [vmem:[%s1 + $0x38] sm:$0xff]
  %v35 = vld [vmem:[%s1 + $0x40] sm:$0xff]
  %v36 = vld [vmem:[%s1 + $0x48] sm:$0xff]
  %v37 = vld [vmem:[%s1 + $0x50] sm:$0xff]
  %v38 = vld [vmem:[%s1 + $0x58] sm:$0xff]
  %v39 = vld [vmem:[%s1 + $0x60] sm:$0xff]
  %v40 = vld [vmem:[%s1 + $0x68] sm:$0xff]
  %v41 = vld [vmem:[%s1 + $0x70] sm:$0xff]
  %v42 = vld [vmem:[%s1 + $0x78] sm:$0xff]
  %v43 = vld [vmem:[%s2] sm:$0x1]
  %v45 = vlaneseq
  %v46 = vshrl.u32 %v45, 7
  %v47 = vsub.s32 0, %v46
  %v48 = vrot.slane %v43, %v47
  %50 = vmatprep.subr.mxu0 0.0
  %51 = vmatpush1.msra.mxu0 %v42
  %52 = vmatprep.subr.mxu0 0.0
  %53 = vmatpush1.msra.mxu0 %v41
  %54 = vmatprep.subr.mxu0 0.0
  %55 = vmatpush1.msra.mxu0 %v40
  %56 = vmatprep.subr.mxu0 0.0
  %57 = vmatpush1.msra.mxu0 %v39
  %58 = vmatprep.subr.mxu0 0.0
  %59 = vmatpush1.msra.mxu0 %v38
  %60 = vmatprep.subr.mxu0 0.0
  %61 = vmatpush1.msra.mxu0 %v37
  %62 = vmatprep.subr.mxu0 0.0
  %63 = vmatpush1.msra.mxu0 %v36
  %64 = vmatprep.subr.mxu0 0.0
  %65 = vmatpush1.msra.mxu0 %v35
  %66 = vmatprep.subr.mxu0 0.0
  %67 = vmatpush1.msra.mxu0 %v34
  %68 = vmatprep.subr.mxu0 0.0
  %69 = vmatpush1.msra.mxu0 %v33
  %70 = vmatprep.subr.mxu0 0.0
  %71 = vmatpush1.msra.mxu0 %v32
  %72 = vmatprep.subr.mxu0 0.0
  %73 = vmatpush1.msra.mxu0 %v31
  %74 = vmatprep.subr.mxu0 0.0
  %75 = vmatpush1.msra.mxu0 %v30
  %76 = vmatprep.subr.mxu0 0.0
  %77 = vmatpush1.msra.mxu0 %v29
  %78 = vmatprep.subr.mxu0 0.0
  %79 = vmatpush1.msra.mxu0 %v28
  %80 = vmatprep.subr.mxu0 0.0
  %81 = vmatpush1.msra.mxu0 %v27
  %82 = vmatprep.subr.mxu0 0.0
  %83 = vmatpush2.msra.mxu0 0.0
  %84 = vmatprep.subr.mxu0 0.0
  %85 = vmatpush2.msra.mxu0 0.0
  %86 = vmatprep.subr.mxu0 0.0
  %87 = vmatpush2.msra.mxu0 0.0
  %88 = vmatprep.subr.mxu0 0.0
  %89 = vmatpush2.msra.mxu0 0.0
  %90 = vmatprep.subr.mxu0 0.0
  %91 = vmatpush2.msra.mxu0 0.0
  %92 = vmatprep.subr.mxu0 0.0
  %93 = vmatpush2.msra.mxu0 0.0
  %94 = vmatprep.subr.mxu0 0.0
  %95 = vmatpush2.msra.mxu0 0.0
  %96 = vmatprep.subr.mxu0 0.0
  %97 = vmatpush2.msra.mxu0 0.0
  %98 = vmatprep.subr.mxu0 0.0
  %99 = vmatpush2.msra.mxu0 0.0
  %100 = vmatprep.subr.mxu0 0.0
  %101 = vmatpush2.msra.mxu0 0.0
  %102 = vmatprep.subr.mxu0 0.0
  %103 = vmatpush2.msra.mxu0 0.0
  %104 = vmatprep.subr.mxu0 0.0
  %105 = vmatpush2.msra.mxu0 0.0
  %106 = vmatprep.subr.mxu0 0.0
  %107 = vmatpush2.msra.mxu0 0.0
  %108 = vmatprep.subr.mxu0 0.0
  %109 = vmatpush2.msra.mxu0 0.0
  %110 = vmatprep.subr.mxu0 0.0
  %111 = vmatpush2.msra.mxu0 0.0
  %112 = vmatprep.subr.mxu0 0.0
  %113 = vmatpush2.msra.mxu0 0.0
  %114 = vmatprep.mubr.f32.mxu0 0.0
  %115 = vmatmul.mubr.f32.gmra.mxu0 %v26
  %v116 = vpop.f32.mrf.mxu0
  %v117 = vadd.f32 %v48, %v116
  %v118 = vpop.f32.mrf.mxu0
  %119 = vdwg.mxu0
  %v120 = vmax.f32 %v117, 0.0
  %v121 = vld [vmem:[%s3] sm:$0xff]
  %v122 = vld [vmem:[%s3 + $0x8] sm:$0xff]
  %v123 = vld [vmem:[%s3 + $0x10] sm:$0xff]
  %v124 = vld [vmem:[%s3 + $0x18] sm:$0xff]
  %v125 = vld [vmem:[%s3 + $0x20] sm:$0xff]
  %v126 = vld [vmem:[%s3 + $0x28] sm:$0xff]
  %v127 = vld [vmem:[%s3 + $0x30] sm:$0xff]
  %v128 = vld [vmem:[%s3 + $0x38] sm:$0xff]
  %v129 = vld [vmem:[%s4] sm:$0x1]
  %v131 = vlaneseq
  %v132 = vshrl.u32 %v131, 7
  %v133 = vsub.s32 0, %v132
  %v134 = vrot.slane %v129, %v133
  %vm136 = vcmask 523264
  %v138 = vsel %vm136, %v120, 0
  %140 = vmatprep.subr.mxu0 0.0
  %141 = vmatpush1.msra.mxu0 0.0
  %142 = vmatprep.subr.mxu0 0.0
  %143 = vmatpush1.msra.mxu0 0.0
  %144 = vmatprep.subr.mxu0 0.0
  %145 = vmatpush1.msra.mxu0 0.0
  %146 = vmatprep.subr.mxu0 0.0
  %147 = vmatpush1.msra.mxu0 0.0
  %148 = vmatprep.subr.mxu0 0.0
  %149 = vmatpush1.msra.mxu0 0.0
  %150 = vmatprep.subr.mxu0 0.0
  %151 = vmatpush1.msra.mxu0 0.0
  %152 = vmatprep.subr.mxu0 0.0
  %153 = vmatpush1.msra.mxu0 0.0
  %154 = vmatprep.subr.mxu0 0.0
  %155 = vmatpush1.msra.mxu0 0.0
  %156 = vmatprep.subr.mxu0 0.0
  %157 = vmatpush1.msra.mxu0 %v128
  %158 = vmatprep.subr.mxu0 0.0
  %159 = vmatpush1.msra.mxu0 %v127
  %160 = vmatprep.subr.mxu0 0.0
  %161 = vmatpush1.msra.mxu0 %v126
  %162 = vmatprep.subr.mxu0 0.0
  %163 = vmatpush1.msra.mxu0 %v125
  %164 = vmatprep.subr.mxu0 0.0
  %165 = vmatpush1.msra.mxu0 %v124
  %166 = vmatprep.subr.mxu0 0.0
  %167 = vmatpush1.msra.mxu0 %v123
  %168 = vmatprep.subr.mxu0 0.0
  %169 = vmatpush1.msra.mxu0 %v122
  %170 = vmatprep.subr.mxu0 0.0
  %171 = vmatpush1.msra.mxu0 %v121
  %172 = vmatprep.subr.mxu0 0.0
  %173 = vmatpush2.msra.mxu0 0.0
  %174 = vmatprep.subr.mxu0 0.0
  %175 = vmatpush2.msra.mxu0 0.0
  %176 = vmatprep.subr.mxu0 0.0
  %177 = vmatpush2.msra.mxu0 0.0
  %178 = vmatprep.subr.mxu0 0.0
  %179 = vmatpush2.msra.mxu0 0.0
  %180 = vmatprep.subr.mxu0 0.0
  %181 = vmatpush2.msra.mxu0 0.0
  %182 = vmatprep.subr.mxu0 0.0
  %183 = vmatpush2.msra.mxu0 0.0
  %184 = vmatprep.subr.mxu0 0.0
  %185 = vmatpush2.msra.mxu0 0.0
  %186 = vmatprep.subr.mxu0 0.0
  %187 = vmatpush2.msra.mxu0 0.0
  %188 = vmatprep.subr.mxu0 0.0
  %189 = vmatpush2.msra.mxu0 0.0
  %190 = vmatprep.subr.mxu0 0.0
  %191 = vmatpush2.msra.mxu0 0.0
  %192 = vmatprep.subr.mxu0 0.0
  %193 = vmatpush2.msra.mxu0 0.0
  %194 = vmatprep.subr.mxu0 0.0
  %195 = vmatpush2.msra.mxu0 0.0
  %196 = vmatprep.subr.mxu0 0.0
  %197 = vmatpush2.msra.mxu0 0.0
  %198 = vmatprep.subr.mxu0 0.0
  %199 = vmatpush2.msra.mxu0 0.0
  %200 = vmatprep.subr.mxu0 0.0
  %201 = vmatpush2.msra.mxu0 0.0
  %202 = vmatprep.subr.mxu0 0.0
  %203 = vmatpush2.msra.mxu0 0.0
  %204 = vmatprep.mubr.f32.mxu0 0.0
  %205 = vmatmul.mubr.f32.gmra.mxu0 %v138
  %v206 = vpop.f32.mrf.mxu0
  %v207 = vadd.f32 %v134, %v206
  %v208 = vpop.f32.mrf.mxu0
  %209 = vdwg.mxu0
  %v210 = vmax.f32 %v207, 0.0
  %v211 = vld [vmem:[%s5] sm:$0xff]
  %v212 = vld [vmem:[%s5 + $0x8] sm:$0xff]
  %v213 = vld [vmem:[%s5 + $0x10] sm:$0xff]
  %v214 = vld [vmem:[%s5 + $0x18] sm:$0xff]
  %v215 = vld [vmem:[%s5 + $0x20] sm:$0xff]
  %v216 = vld [vmem:[%s5 + $0x28] sm:$0xff]
  %v217 = vld [vmem:[%s5 + $0x30] sm:$0xff]
  %v218 = vld [vmem:[%s5 + $0x38] sm:$0xff]
  %v219 = vld [vmem:[%s5 + $0x40] sm:$0xff]
  %v220 = vld [vmem:[%s5 + $0x48] sm:$0xff]
  %v221 = vld [vmem:[%s5 + $0x50] sm:$0xff]
  %v222 = vld [vmem:[%s5 + $0x58] sm:$0xff]
  %v223 = vld [vmem:[%s5 + $0x60] sm:$0xff]
  %v224 = vld [vmem:[%s5 + $0x68] sm:$0xff]
  %v225 = vld [vmem:[%s5 + $0x70] sm:$0xff]
  %v226 = vld [vmem:[%s5 + $0x78] sm:$0xff]
  %v227 = vld [vmem:[%s6] sm:$0x3]
  %v229 = vlaneseq
  %v230 = vshrl.u32 %v229, 7
  %v231 = vsub.s32 0, %v230
  %v232 = vrot.slane %v227, %v231
  %v233 = vlaneseq
  %v234 = vshrl.u32 %v233, 7
  %v235 = vsub.s32 1, %v234
  %v236 = vrot.slane %v227, %v235
  %v240 = vsel %vm136, %v210, 0
  %242 = vmatprep.subr.mxu0 0.0
  %243 = vmatpush1.msra.mxu0 0.0
  %244 = vmatprep.subr.mxu0 0.0
  %245 = vmatpush1.msra.mxu0 0.0
  %246 = vmatprep.subr.mxu0 0.0
  %247 = vmatpush1.msra.mxu0 0.0
  %248 = vmatprep.subr.mxu0 0.0
  %249 = vmatpush1.msra.mxu0 0.0
  %250 = vmatprep.subr.mxu0 0.0
  %251 = vmatpush1.msra.mxu0 0.0
  %252 = vmatprep.subr.mxu0 0.0
  %253 = vmatpush1.msra.mxu0 0.0
  %254 = vmatprep.subr.mxu0 0.0
  %255 = vmatpush1.msra.mxu0 0.0
  %256 = vmatprep.subr.mxu0 0.0
  %257 = vmatpush1.msra.mxu0 0.0
  %258 = vmatprep.subr.mxu0 %v226
  %259 = vmatpush1.msra.mxu0 %v225
  %260 = vmatprep.subr.mxu0 %v224
  %261 = vmatpush1.msra.mxu0 %v223
  %262 = vmatprep.subr.mxu0 %v222
  %263 = vmatpush1.msra.mxu0 %v221
  %264 = vmatprep.subr.mxu0 %v220
  %265 = vmatpush1.msra.mxu0 %v219
  %266 = vmatprep.subr.mxu0 %v218
  %267 = vmatpush1.msra.mxu0 %v217
  %268 = vmatprep.subr.mxu0 %v216
  %269 = vmatpush1.msra.mxu0 %v215
  %270 = vmatprep.subr.mxu0 %v214
  %271 = vmatpush1.msra.mxu0 %v213
  %272 = vmatprep.subr.mxu0 %v212
  %273 = vmatpush1.msra.mxu0 %v211
  %274 = vmatprep.subr.mxu0 0.0
  %275 = vmatpush2.msra.mxu0 0.0
  %276 = vmatprep.subr.mxu0 0.0
  %277 = vmatpush2.msra.mxu0 0.0
  %278 = vmatprep.subr.mxu0 0.0
  %279 = vmatpush2.msra.mxu0 0.0
  %280 = vmatprep.subr.mxu0 0.0
  %281 = vmatpush2.msra.mxu0 0.0
  %282 = vmatprep.subr.mxu0 0.0
  %283 = vmatpush2.msra.mxu0 0.0
  %284 = vmatprep.subr.mxu0 0.0
  %285 = vmatpush2.msra.mxu0 0.0
  %286 = vmatprep.subr.mxu0 0.0
  %287 = vmatpush2.msra.mxu0 0.0
  %288 = vmatprep.subr.mxu0 0.0
  %289 = vmatpush2.msra.mxu0 0.0
  %290 = vmatprep.subr.mxu0 0.0
  %291 = vmatpush2.msra.mxu0 0.0
  %292 = vmatprep.subr.mxu0 0.0
  %293 = vmatpush2.msra.mxu0 0.0
  %294 = vmatprep.subr.mxu0 0.0
  %295 = vmatpush2.msra.mxu0 0.0
  %296 = vmatprep.subr.mxu0 0.0
  %297 = vmatpush2.msra.mxu0 0.0
  %298 = vmatprep.subr.mxu0 0.0
  %299 = vmatpush2.msra.mxu0 0.0
  %300 = vmatprep.subr.mxu0 0.0
  %301 = vmatpush2.msra.mxu0 0.0
  %302 = vmatprep.subr.mxu0 0.0
  %303 = vmatpush2.msra.mxu0 0.0
  %304 = vmatprep.subr.mxu0 0.0
  %305 = vmatpush2.msra.mxu0 0.0
  %306 = vmatprep.mubr.f32.mxu0 0.0
  %307 = vmatmul.mubr.f32.gmra.mxu0 %v240
  %v308 = vpop.f32.mrf.mxu0
  %v309 = vadd.f32 %v232, %v308
  %v310 = vpop.f32.mrf.mxu0
  %v311 = vadd.f32 %v236, %v310
  %312 = vdwg.mxu0
  %v313 = vtanh.pop %v309
  %v314 = vmul.f32 %v313, 1.442695
  %v315 = vpow.pop %v314
  %v316 = vmul.f32 %v26, %v315
  %v317 = vadd.f32 %v316, %v311
  %v318 = vadd.f32 %v313, 0.0
  %s319 = scalar_lea.vmem %s1, 128
  %v320 = vld [vmem:[%s319] sm:$0xff]
  %v321 = vld [vmem:[%s319 + $0x8] sm:$0xff]
  %v322 = vld [vmem:[%s319 + $0x10] sm:$0xff]
  %v323 = vld [vmem:[%s319 + $0x18] sm:$0xff]
  %v324 = vld [vmem:[%s319 + $0x20] sm:$0xff]
  %v325 = vld [vmem:[%s319 + $0x28] sm:$0xff]
  %v326 = vld [vmem:[%s319 + $0x30] sm:$0xff]
  %v327 = vld [vmem:[%s319 + $0x38] sm:$0xff]
  %v328 = vld [vmem:[%s319 + $0x40] sm:$0xff]
  %v329 = vld [vmem:[%s319 + $0x48] sm:$0xff]
  %v330 = vld [vmem:[%s319 + $0x50] sm:$0xff]
  %v331 = vld [vmem:[%s319 + $0x58] sm:$0xff]
  %v332 = vld [vmem:[%s319 + $0x60] sm:$0xff]
  %v333 = vld [vmem:[%s319 + $0x68] sm:$0xff]
  %v334 = vld [vmem:[%s319 + $0x70] sm:$0xff]
  %v335 = vld [vmem:[%s319 + $0x78] sm:$0xff]
  %s336 = scalar_lea.vmem %s2, 1
  %v337 = vld [vmem:[%s336] sm:$0x1]
  %v339 = vlaneseq
  %v340 = vshrl.u32 %v339, 7
  %v341 = vsub.s32 0, %v340
  %v342 = vrot.slane %v337, %v341
  %344 = vmatprep.subr.mxu0 0.0
  %345 = vmatpush1.msra.mxu0 %v335
  %346 = vmatprep.subr.mxu0 0.0
  %347 = vmatpush1.msra.mxu0 %v334
  %348 = vmatprep.subr.mxu0 0.0
  %349 = vmatpush1.msra.mxu0 %v333
  %350 = vmatprep.subr.mxu0 0.0
  %351 = vmatpush1.msra.mxu0 %v332
  %352 = vmatprep.subr.mxu0 0.0
  %353 = vmatpush1.msra.mxu0 %v331
  %354 = vmatprep.subr.mxu0 0.0
  %355 = vmatpush1.msra.mxu0 %v330
  %356 = vmatprep.subr.mxu0 0.0
  %357 = vmatpush1.msra.mxu0 %v329
  %358 = vmatprep.subr.mxu0 0.0
  %359 = vmatpush1.msra.mxu0 %v328
  %360 = vmatprep.subr.mxu0 0.0
  %361 = vmatpush1.msra.mxu0 %v327
  %362 = vmatprep.subr.mxu0 0.0
  %363 = vmatpush1.msra.mxu0 %v326
  %364 = vmatprep.subr.mxu0 0.0
  %365 = vmatpush1.msra.mxu0 %v325
  %366 = vmatprep.subr.mxu0 0.0
  %367 = vmatpush1.msra.mxu0 %v324
  %368 = vmatprep.subr.mxu0 0.0
  %369 = vmatpush1.msra.mxu0 %v323
  %370 = vmatprep.subr.mxu0 0.0
  %371 = vmatpush1.msra.mxu0 %v322
  %372 = vmatprep.subr.mxu0 0.0
  %373 = vmatpush1.msra.mxu0 %v321
  %374 = vmatprep.subr.mxu0 0.0
  %375 = vmatpush1.msra.mxu0 %v320
  %376 = vmatprep.subr.mxu0 0.0
  %377 = vmatpush2.msra.mxu0 0.0
  %378 = vmatprep.subr.mxu0 0.0
  %379 = vmatpush2.msra.mxu0 0.0
  %380 = vmatprep.subr.mxu0 0.0
  %381 = vmatpush2.msra.mxu0 0.0
  %382 = vmatprep.subr.mxu0 0.0
  %383 = vmatpush2.msra.mxu0 0.0
  %384 = vmatprep.subr.mxu0 0.0
  %385 = vmatpush2.msra.mxu0 0.0
  %386 = vmatprep.subr.mxu0 0.0
  %387 = vmatpush2.msra.mxu0 0.0
  %388 = vmatprep.subr.mxu0 0.0
  %389 = vmatpush2.msra.mxu0 0.0
  %390 = vmatprep.subr.mxu0 0.0
  %391 = vmatpush2.msra.mxu0 0.0
  %392 = vmatprep.subr.mxu0 0.0
  %393 = vmatpush2.msra.mxu0 0.0
  %394 = vmatprep.subr.mxu0 0.0
  %395 = vmatpush2.msra.mxu0 0.0
  %396 = vmatprep.subr.mxu0 0.0
  %397 = vmatpush2.msra.mxu0 0.0
  %398 = vmatprep.subr.mxu0 0.0
  %399 = vmatpush2.msra.mxu0 0.0
  %400 = vmatprep.subr.mxu0 0.0
  %401 = vmatpush2.msra.mxu0 0.0
  %402 = vmatprep.subr.mxu0 0.0
  %403 = vmatpush2.msra.mxu0 0.0
  %404 = vmatprep.subr.mxu0 0.0
  %405 = vmatpush2.msra.mxu0 0.0
  %406 = vmatprep.subr.mxu0 0.0
  %407 = vmatpush2.msra.mxu0 0.0
  %408 = vmatprep.mubr.f32.mxu0 0.0
  %409 = vmatmul.mubr.f32.gmra.mxu0 %v317
  %v410 = vpop.f32.mrf.mxu0
  %v411 = vadd.f32 %v342, %v410
  %v412 = vpop.f32.mrf.mxu0
  %413 = vdwg.mxu0
  %v414 = vmax.f32 %v411, 0.0
  %s415 = scalar_lea.vmem %s3, 64
  %v416 = vld [vmem:[%s415] sm:$0xff]
  %v417 = vld [vmem:[%s415 + $0x8] sm:$0xff]
  %v418 = vld [vmem:[%s415 + $0x10] sm:$0xff]
  %v419 = vld [vmem:[%s415 + $0x18] sm:$0xff]
  %v420 = vld [vmem:[%s415 + $0x20] sm:$0xff]
  %v421 = vld [vmem:[%s415 + $0x28] sm:$0xff]
  %v422 = vld [vmem:[%s415 + $0x30] sm:$0xff]
  %v423 = vld [vmem:[%s415 + $0x38] sm:$0xff]
  %s424 = scalar_lea.vmem %s4, 1
  %v425 = vld [vmem:[%s424] sm:$0x1]
  %v427 = vlaneseq
  %v428 = vshrl.u32 %v427, 7
  %v429 = vsub.s32 0, %v428
  %v430 = vrot.slane %v425, %v429
  %v433 = vsel %vm136, %v414, 0
  %435 = vmatprep.subr.mxu0 0.0
  %436 = vmatpush1.msra.mxu0 0.0
  %437 = vmatprep.subr.mxu0 0.0
  %438 = vmatpush1.msra.mxu0 0.0
  %439 = vmatprep.subr.mxu0 0.0
  %440 = vmatpush1.msra.mxu0 0.0
  %441 = vmatprep.subr.mxu0 0.0
  %442 = vmatpush1.msra.mxu0 0.0
  %443 = vmatprep.subr.mxu0 0.0
  %444 = vmatpush1.msra.mxu0 0.0
  %445 = vmatprep.subr.mxu0 0.0
  %446 = vmatpush1.msra.mxu0 0.0
  %447 = vmatprep.subr.mxu0 0.0
  %448 = vmatpush1.msra.mxu0 0.0
  %449 = vmatprep.subr.mxu0 0.0
  %450 = vmatpush1.msra.mxu0 0.0
  %451 = vmatprep.subr.mxu0 0.0
  %452 = vmatpush1.msra.mxu0 %v423
  %453 = vmatprep.subr.mxu0 0.0
  %454 = vmatpush1.msra.mxu0 %v422
  %455 = vmatprep.subr.mxu0 0.0
  %456 = vmatpush1.msra.mxu0 %v421
  %457 = vmatprep.subr.mxu0 0.0
  %458 = vmatpush1.msra.mxu0 %v420
  %459 = vmatprep.subr.mxu0 0.0
  %460 = vmatpush1.msra.mxu0 %v419
  %461 = vmatprep.subr.mxu0 0.0
  %462 = vmatpush1.msra.mxu0 %v418
  %463 = vmatprep.subr.mxu0 0.0
  %464 = vmatpush1.msra.mxu0 %v417
  %465 = vmatprep.subr.mxu0 0.0
  %466 = vmatpush1.msra.mxu0 %v416
  %467 = vmatprep.subr.mxu0 0.0
  %468 = vmatpush2.msra.mxu0 0.0
  %469 = vmatprep.subr.mxu0 0.0
  %470 = vmatpush2.msra.mxu0 0.0
  %471 = vmatprep.subr.mxu0 0.0
  %472 = vmatpush2.msra.mxu0 0.0
  %473 = vmatprep.subr.mxu0 0.0
  %474 = vmatpush2.msra.mxu0 0.0
  %475 = vmatprep.subr.mxu0 0.0
  %476 = vmatpush2.msra.mxu0 0.0
  %477 = vmatprep.subr.mxu0 0.0
  %478 = vmatpush2.msra.mxu0 0.0
  %479 = vmatprep.subr.mxu0 0.0
  %480 = vmatpush2.msra.mxu0 0.0
  %481 = vmatprep.subr.mxu0 0.0
  %482 = vmatpush2.msra.mxu0 0.0
  %483 = vmatprep.subr.mxu0 0.0
  %484 = vmatpush2.msra.mxu0 0.0
  %485 = vmatprep.subr.mxu0 0.0
  %486 = vmatpush2.msra.mxu0 0.0
  %487 = vmatprep.subr.mxu0 0.0
  %488 = vmatpush2.msra.mxu0 0.0
  %489 = vmatprep.subr.mxu0 0.0
  %490 = vmatpush2.msra.mxu0 0.0
  %491 = vmatprep.subr.mxu0 0.0
  %492 = vmatpush2.msra.mxu0 0.0
  %493 = vmatprep.subr.mxu0 0.0
  %494 = vmatpush2.msra.mxu0 0.0
  %495 = vmatprep.subr.mxu0 0.0
  %496 = vmatpush2.msra.mxu0 0.0
  %497 = vmatprep.subr.mxu0 0.0
  %498 = vmatpush2.msra.mxu0 0.0
  %499 = vmatprep.mubr.f32.mxu0 0.0
  %500 = vmatmul.mubr.f32.gmra.mxu0 %v433
  %v501 = vpop.f32.mrf.mxu0
  %v502 = vadd.f32 %v430, %v501
  %v503 = vpop.f32.mrf.mxu0
  %504 = vdwg.mxu0
  %v505 = vmax.f32 %v502, 0.0
  %s506 = scalar_lea.vmem %s5, 128
  %v507 = vld [vmem:[%s506] sm:$0xff]
  %v508 = vld [vmem:[%s506 + $0x8] sm:$0xff]
  %v509 = vld [vmem:[%s506 + $0x10] sm:$0xff]
  %v510 = vld [vmem:[%s506 + $0x18] sm:$0xff]
  %v511 = vld [vmem:[%s506 + $0x20] sm:$0xff]
  %v512 = vld [vmem:[%s506 + $0x28] sm:$0xff]
  %v513 = vld [vmem:[%s506 + $0x30] sm:$0xff]
  %v514 = vld [vmem:[%s506 + $0x38] sm:$0xff]
  %v515 = vld [vmem:[%s506 + $0x40] sm:$0xff]
  %v516 = vld [vmem:[%s506 + $0x48] sm:$0xff]
  %v517 = vld [vmem:[%s506 + $0x50] sm:$0xff]
  %v518 = vld [vmem:[%s506 + $0x58] sm:$0xff]
  %v519 = vld [vmem:[%s506 + $0x60] sm:$0xff]
  %v520 = vld [vmem:[%s506 + $0x68] sm:$0xff]
  %v521 = vld [vmem:[%s506 + $0x70] sm:$0xff]
  %v522 = vld [vmem:[%s506 + $0x78] sm:$0xff]
  %s523 = scalar_lea.vmem %s6, 2
  %v524 = vld [vmem:[%s523] sm:$0x3]
  %v526 = vlaneseq
  %v527 = vshrl.u32 %v526, 7
  %v528 = vsub.s32 0, %v527
  %v529 = vrot.slane %v524, %v528
  %v530 = vlaneseq
  %v531 = vshrl.u32 %v530, 7
  %v532 = vsub.s32 1, %v531
  %v533 = vrot.slane %v524, %v532
  %v537 = vsel %vm136, %v505, 0
  %539 = vmatprep.subr.mxu0 0.0
  %540 = vmatpush1.msra.mxu0 0.0
  %541 = vmatprep.subr.mxu0 0.0
  %542 = vmatpush1.msra.mxu0 0.0
  %543 = vmatprep.subr.mxu0 0.0
  %544 = vmatpush1.msra.mxu0 0.0
  %545 = vmatprep.subr.mxu0 0.0
  %546 = vmatpush1.msra.mxu0 0.0
  %547 = vmatprep.subr.mxu0 0.0
  %548 = vmatpush1.msra.mxu0 0.0
  %549 = vmatprep.subr.mxu0 0.0
  %550 = vmatpush1.msra.mxu0 0.0
  %551 = vmatprep.subr.mxu0 0.0
  %552 = vmatpush1.msra.mxu0 0.0
  %553 = vmatprep.subr.mxu0 0.0
  %554 = vmatpush1.msra.mxu0 0.0
  %555 = vmatprep.subr.mxu0 %v522
  %556 = vmatpush1.msra.mxu0 %v521
  %557 = vmatprep.subr.mxu0 %v520
  %558 = vmatpush1.msra.mxu0 %v519
  %559 = vmatprep.subr.mxu0 %v518
  %560 = vmatpush1.msra.mxu0 %v517
  %561 = vmatprep.subr.mxu0 %v516
  %562 = vmatpush1.msra.mxu0 %v515
  %563 = vmatprep.subr.mxu0 %v514
  %564 = vmatpush1.msra.mxu0 %v513
  %565 = vmatprep.subr.mxu0 %v512
  %566 = vmatpush1.msra.mxu0 %v511
  %567 = vmatprep.subr.mxu0 %v510
  %568 = vmatpush1.msra.mxu0 %v509
  %569 = vmatprep.subr.mxu0 %v508
  %570 = vmatpush1.msra.mxu0 %v507
  %571 = vmatprep.subr.mxu0 0.0
  %572 = vmatpush2.msra.mxu0 0.0
  %573 = vmatprep.subr.mxu0 0.0
  %574 = vmatpush2.msra.mxu0 0.0
  %575 = vmatprep.subr.mxu0 0.0
  %576 = vmatpush2.msra.mxu0 0.0
  %577 = vmatprep.subr.mxu0 0.0
  %578 = vmatpush2.msra.mxu0 0.0
  %579 = vmatprep.subr.mxu0 0.0
  %580 = vmatpush2.msra.mxu0 0.0
  %581 = vmatprep.subr.mxu0 0.0
  %582 = vmatpush2.msra.mxu0 0.0
  %583 = vmatprep.subr.mxu0 0.0
  %584 = vmatpush2.msra.mxu0 0.0
  %585 = vmatprep.subr.mxu0 0.0
  %586 = vmatpush2.msra.mxu0 0.0
  %587 = vmatprep.subr.mxu0 0.0
  %588 = vmatpush2.msra.mxu0 0.0
  %589 = vmatprep.subr.mxu0 0.0
  %590 = vmatpush2.msra.mxu0 0.0
  %591 = vmatprep.subr.mxu0 0.0
  %592 = vmatpush2.msra.mxu0 0.0
  %593 = vmatprep.subr.mxu0 0.0
  %594 = vmatpush2.msra.mxu0 0.0
  %595 = vmatprep.subr.mxu0 0.0
  %596 = vmatpush2.msra.mxu0 0.0
  %597 = vmatprep.subr.mxu0 0.0
  %598 = vmatpush2.msra.mxu0 0.0
  %599 = vmatprep.subr.mxu0 0.0
  %600 = vmatpush2.msra.mxu0 0.0
  %601 = vmatprep.subr.mxu0 0.0
  %602 = vmatpush2.msra.mxu0 0.0
  %603 = vmatprep.mubr.f32.mxu0 0.0
  %604 = vmatmul.mubr.f32.gmra.mxu0 %v537
  %v605 = vpop.f32.mrf.mxu0
  %v606 = vadd.f32 %v529, %v605
  %v607 = vpop.f32.mrf.mxu0
  %v608 = vadd.f32 %v533, %v607
  %609 = vdwg.mxu0
  %v610 = vtanh.pop %v606
  %v611 = vmul.f32 %v610, 1.442695
  %v612 = vpow.pop %v611
  %v613 = vmul.f32 %v317, %v612
  %v614 = vadd.f32 %v613, %v608
  %v615 = vadd.f32 %v318, %v610
  %s616 = scalar_lea.vmem %s1, 256
  %v617 = vld [vmem:[%s616] sm:$0xff]
  %v618 = vld [vmem:[%s616 + $0x8] sm:$0xff]
  %v619 = vld [vmem:[%s616 + $0x10] sm:$0xff]
  %v620 = vld [vmem:[%s616 + $0x18] sm:$0xff]
  %v621 = vld [vmem:[%s616 + $0x20] sm:$0xff]
  %v622 = vld [vmem:[%s616 + $0x28] sm:$0xff]
  %v623 = vld [vmem:[%s616 + $0x30] sm:$0xff]
  %v624 = vld [vmem:[%s616 + $0x38] sm:$0xff]
  %v625 = vld [vmem:[%s616 + $0x40] sm:$0xff]
  %v626 = vld [vmem:[%s616 + $0x48] sm:$0xff]
  %v627 = vld [vmem:[%s616 + $0x50] sm:$0xff]
  %v628 = vld [vmem:[%s616 + $0x58] sm:$0xff]
  %v629 = vld [vmem:[%s616 + $0x60] sm:$0xff]
  %v630 = vld [vmem:[%s616 + $0x68] sm:$0xff]
  %v631 = vld [vmem:[%s616 + $0x70] sm:$0xff]
  %v632 = vld [vmem:[%s616 + $0x78] sm:$0xff]
  %s633 = scalar_lea.vmem %s2, 2
  %v634 = vld [vmem:[%s633] sm:$0x1]
  %v636 = vlaneseq
  %v637 = vshrl.u32 %v636, 7
  %v638 = vsub.s32 0, %v637
  %v639 = vrot.slane %v634, %v638
  %641 = vmatprep.subr.mxu0 0.0
  %642 = vmatpush1.msra.mxu0 %v632
  %643 = vmatprep.subr.mxu0 0.0
  %644 = vmatpush1.msra.mxu0 %v631
  %645 = vmatprep.subr.mxu0 0.0
  %646 = vmatpush1.msra.mxu0 %v630
  %647 = vmatprep.subr.mxu0 0.0
  %648 = vmatpush1.msra.mxu0 %v629
  %649 = vmatprep.subr.mxu0 0.0
  %650 = vmatpush1.msra.mxu0 %v628
  %651 = vmatprep.subr.mxu0 0.0
  %652 = vmatpush1.msra.mxu0 %v627
  %653 = vmatprep.subr.mxu0 0.0
  %654 = vmatpush1.msra.mxu0 %v626
  %655 = vmatprep.subr.mxu0 0.0
  %656 = vmatpush1.msra.mxu0 %v625
  %657 = vmatprep.subr.mxu0 0.0
  %658 = vmatpush1.msra.mxu0 %v624
  %659 = vmatprep.subr.mxu0 0.0
  %660 = vmatpush1.msra.mxu0 %v623
  %661 = vmatprep.subr.mxu0 0.0
  %662 = vmatpush1.msra.mxu0 %v622
  %663 = vmatprep.subr.mxu0 0.0
  %664 = vmatpush1.msra.mxu0 %v621
  %665 = vmatprep.subr.mxu0 0.0
  %666 = vmatpush1.msra.mxu0 %v620
  %667 = vmatprep.subr.mxu0 0.0
  %668 = vmatpush1.msra.mxu0 %v619
  %669 = vmatprep.subr.mxu0 0.0
  %670 = vmatpush1.msra.mxu0 %v618
  %671 = vmatprep.subr.mxu0 0.0
  %672 = vmatpush1.msra.mxu0 %v617
  %673 = vmatprep.subr.mxu0 0.0
  %674 = vmatpush2.msra.mxu0 0.0
  %675 = vmatprep.subr.mxu0 0.0
  %676 = vmatpush2.msra.mxu0 0.0
  %677 = vmatprep.subr.mxu0 0.0
  %678 = vmatpush2.msra.mxu0 0.0
  %679 = vmatprep.subr.mxu0 0.0
  %680 = vmatpush2.msra.mxu0 0.0
  %681 = vmatprep.subr.mxu0 0.0
  %682 = vmatpush2.msra.mxu0 0.0
  %683 = vmatprep.subr.mxu0 0.0
  %684 = vmatpush2.msra.mxu0 0.0
  %685 = vmatprep.subr.mxu0 0.0
  %686 = vmatpush2.msra.mxu0 0.0
  %687 = vmatprep.subr.mxu0 0.0
  %688 = vmatpush2.msra.mxu0 0.0
  %689 = vmatprep.subr.mxu0 0.0
  %690 = vmatpush2.msra.mxu0 0.0
  %691 = vmatprep.subr.mxu0 0.0
  %692 = vmatpush2.msra.mxu0 0.0
  %693 = vmatprep.subr.mxu0 0.0
  %694 = vmatpush2.msra.mxu0 0.0
  %695 = vmatprep.subr.mxu0 0.0
  %696 = vmatpush2.msra.mxu0 0.0
  %697 = vmatprep.subr.mxu0 0.0
  %698 = vmatpush2.msra.mxu0 0.0
  %699 = vmatprep.subr.mxu0 0.0
  %700 = vmatpush2.msra.mxu0 0.0
  %701 = vmatprep.subr.mxu0 0.0
  %702 = vmatpush2.msra.mxu0 0.0
  %703 = vmatprep.subr.mxu0 0.0
  %704 = vmatpush2.msra.mxu0 0.0
  %705 = vmatprep.mubr.f32.mxu0 0.0
  %706 = vmatmul.mubr.f32.gmra.mxu0 %v614
  %v707 = vpop.f32.mrf.mxu0
  %v708 = vadd.f32 %v639, %v707
  %v709 = vpop.f32.mrf.mxu0
  %710 = vdwg.mxu0
  %v711 = vmax.f32 %v708, 0.0
  %s712 = scalar_lea.vmem %s3, 128
  %v713 = vld [vmem:[%s712] sm:$0xff]
  %v714 = vld [vmem:[%s712 + $0x8] sm:$0xff]
  %v715 = vld [vmem:[%s712 + $0x10] sm:$0xff]
  %v716 = vld [vmem:[%s712 + $0x18] sm:$0xff]
  %v717 = vld [vmem:[%s712 + $0x20] sm:$0xff]
  %v718 = vld [vmem:[%s712 + $0x28] sm:$0xff]
  %v719 = vld [vmem:[%s712 + $0x30] sm:$0xff]
  %v720 = vld [vmem:[%s712 + $0x38] sm:$0xff]
  %s721 = scalar_lea.vmem %s4, 2
  %v722 = vld [vmem:[%s721] sm:$0x1]
  %v724 = vlaneseq
  %v725 = vshrl.u32 %v724, 7
  %v726 = vsub.s32 0, %v725
  %v727 = vrot.slane %v722, %v726
  %v730 = vsel %vm136, %v711, 0
  %732 = vmatprep.subr.mxu0 0.0
  %733 = vmatpush1.msra.mxu0 0.0
  %734 = vmatprep.subr.mxu0 0.0
  %735 = vmatpush1.msra.mxu0 0.0
  %736 = vmatprep.subr.mxu0 0.0
  %737 = vmatpush1.msra.mxu0 0.0
  %738 = vmatprep.subr.mxu0 0.0
  %739 = vmatpush1.msra.mxu0 0.0
  %740 = vmatprep.subr.mxu0 0.0
  %741 = vmatpush1.msra.mxu0 0.0
  %742 = vmatprep.subr.mxu0 0.0
  %743 = vmatpush1.msra.mxu0 0.0
  %744 = vmatprep.subr.mxu0 0.0
  %745 = vmatpush1.msra.mxu0 0.0
  %746 = vmatprep.subr.mxu0 0.0
  %747 = vmatpush1.msra.mxu0 0.0
  %748 = vmatprep.subr.mxu0 0.0
  %749 = vmatpush1.msra.mxu0 %v720
  %750 = vmatprep.subr.mxu0 0.0
  %751 = vmatpush1.msra.mxu0 %v719
  %752 = vmatprep.subr.mxu0 0.0
  %753 = vmatpush1.msra.mxu0 %v718
  %754 = vmatprep.subr.mxu0 0.0
  %755 = vmatpush1.msra.mxu0 %v717
  %756 = vmatprep.subr.mxu0 0.0
  %757 = vmatpush1.msra.mxu0 %v716
  %758 = vmatprep.subr.mxu0 0.0
  %759 = vmatpush1.msra.mxu0 %v715
  %760 = vmatprep.subr.mxu0 0.0
  %761 = vmatpush1.msra.mxu0 %v714
  %762 = vmatprep.subr.mxu0 0.0
  %763 = vmatpush1.msra.mxu0 %v713
  %764 = vmatprep.subr.mxu0 0.0
  %765 = vmatpush2.msra.mxu0 0.0
  %766 = vmatprep.subr.mxu0 0.0
  %767 = vmatpush2.msra.mxu0 0.0
  %768 = vmatprep.subr.mxu0 0.0
  %769 = vmatpush2.msra.mxu0 0.0
  %770 = vmatprep.subr.mxu0 0.0
  %771 = vmatpush2.msra.mxu0 0.0
  %772 = vmatprep.subr.mxu0 0.0
  %773 = vmatpush2.msra.mxu0 0.0
  %774 = vmatprep.subr.mxu0 0.0
  %775 = vmatpush2.msra.mxu0 0.0
  %776 = vmatprep.subr.mxu0 0.0
  %777 = vmatpush2.msra.mxu0 0.0
  %778 = vmatprep.subr.mxu0 0.0
  %779 = vmatpush2.msra.mxu0 0.0
  %780 = vmatprep.subr.mxu0 0.0
  %781 = vmatpush2.msra.mxu0 0.0
  %782 = vmatprep.subr.mxu0 0.0
  %783 = vmatpush2.msra.mxu0 0.0
  %784 = vmatprep.subr.mxu0 0.0
  %785 = vmatpush2.msra.mxu0 0.0
  %786 = vmatprep.subr.mxu0 0.0
  %787 = vmatpush2.msra.mxu0 0.0
  %788 = vmatprep.subr.mxu0 0.0
  %789 = vmatpush2.msra.mxu0 0.0
  %790 = vmatprep.subr.mxu0 0.0
  %791 = vmatpush2.msra.mxu0 0.0
  %792 = vmatprep.subr.mxu0 0.0
  %793 = vmatpush2.msra.mxu0 0.0
  %794 = vmatprep.subr.mxu0 0.0
  %795 = vmatpush2.msra.mxu0 0.0
  %796 = vmatprep.mubr.f32.mxu0 0.0
  %797 = vmatmul.mubr.f32.gmra.mxu0 %v730
  %v798 = vpop.f32.mrf.mxu0
  %v799 = vadd.f32 %v727, %v798
  %v800 = vpop.f32.mrf.mxu0
  %801 = vdwg.mxu0
  %v802 = vmax.f32 %v799, 0.0
  %s803 = scalar_lea.vmem %s5, 256
  %v804 = vld [vmem:[%s803] sm:$0xff]
  %v805 = vld [vmem:[%s803 + $0x8] sm:$0xff]
  %v806 = vld [vmem:[%s803 + $0x10] sm:$0xff]
  %v807 = vld [vmem:[%s803 + $0x18] sm:$0xff]
  %v808 = vld [vmem:[%s803 + $0x20] sm:$0xff]
  %v809 = vld [vmem:[%s803 + $0x28] sm:$0xff]
  %v810 = vld [vmem:[%s803 + $0x30] sm:$0xff]
  %v811 = vld [vmem:[%s803 + $0x38] sm:$0xff]
  %v812 = vld [vmem:[%s803 + $0x40] sm:$0xff]
  %v813 = vld [vmem:[%s803 + $0x48] sm:$0xff]
  %v814 = vld [vmem:[%s803 + $0x50] sm:$0xff]
  %v815 = vld [vmem:[%s803 + $0x58] sm:$0xff]
  %v816 = vld [vmem:[%s803 + $0x60] sm:$0xff]
  %v817 = vld [vmem:[%s803 + $0x68] sm:$0xff]
  %v818 = vld [vmem:[%s803 + $0x70] sm:$0xff]
  %v819 = vld [vmem:[%s803 + $0x78] sm:$0xff]
  %s820 = scalar_lea.vmem %s6, 4
  %v821 = vld [vmem:[%s820] sm:$0x3]
  %v823 = vlaneseq
  %v824 = vshrl.u32 %v823, 7
  %v825 = vsub.s32 0, %v824
  %v826 = vrot.slane %v821, %v825
  %v827 = vlaneseq
  %v828 = vshrl.u32 %v827, 7
  %v829 = vsub.s32 1, %v828
  %v830 = vrot.slane %v821, %v829
  %v834 = vsel %vm136, %v802, 0
  %836 = vmatprep.subr.mxu0 0.0
  %837 = vmatpush1.msra.mxu0 0.0
  %838 = vmatprep.subr.mxu0 0.0
  %839 = vmatpush1.msra.mxu0 0.0
  %840 = vmatprep.subr.mxu0 0.0
  %841 = vmatpush1.msra.mxu0 0.0
  %842 = vmatprep.subr.mxu0 0.0
  %843 = vmatpush1.msra.mxu0 0.0
  %844 = vmatprep.subr.mxu0 0.0
  %845 = vmatpush1.msra.mxu0 0.0
  %846 = vmatprep.subr.mxu0 0.0
  %847 = vmatpush1.msra.mxu0 0.0
  %848 = vmatprep.subr.mxu0 0.0
  %849 = vmatpush1.msra.mxu0 0.0
  %850 = vmatprep.subr.mxu0 0.0
  %851 = vmatpush1.msra.mxu0 0.0
  %852 = vmatprep.subr.mxu0 %v819
  %853 = vmatpush1.msra.mxu0 %v818
  %854 = vmatprep.subr.mxu0 %v817
  %855 = vmatpush1.msra.mxu0 %v816
  %856 = vmatprep.subr.mxu0 %v815
  %857 = vmatpush1.msra.mxu0 %v814
  %858 = vmatprep.subr.mxu0 %v813
  %859 = vmatpush1.msra.mxu0 %v812
  %860 = vmatprep.subr.mxu0 %v811
  %861 = vmatpush1.msra.mxu0 %v810
  %862 = vmatprep.subr.mxu0 %v809
  %863 = vmatpush1.msra.mxu0 %v808
  %864 = vmatprep.subr.mxu0 %v807
  %865 = vmatpush1.msra.mxu0 %v806
  %866 = vmatprep.subr.mxu0 %v805
  %867 = vmatpush1.msra.mxu0 %v804
  %868 = vmatprep.subr.mxu0 0.0
  %869 = vmatpush2.msra.mxu0 0.0
  %870 = vmatprep.subr.mxu0 0.0
  %871 = vmatpush2.msra.mxu0 0.0
  %872 = vmatprep.subr.mxu0 0.0
  %873 = vmatpush2.msra.mxu0 0.0
  %874 = vmatprep.subr.mxu0 0.0
  %875 = vmatpush2.msra.mxu0 0.0
  %876 = vmatprep.subr.mxu0 0.0
  %877 = vmatpush2.msra.mxu0 0.0
  %878 = vmatprep.subr.mxu0 0.0
  %879 = vmatpush2.msra.mxu0 0.0
  %880 = vmatprep.subr.mxu0 0.0
  %881 = vmatpush2.msra.mxu0 0.0
  %882 = vmatprep.subr.mxu0 0.0
  %883 = vmatpush2.msra.mxu0 0.0
  %884 = vmatprep.subr.mxu0 0.0
  %885 = vmatpush2.msra.mxu0 0.0
  %886 = vmatprep.subr.mxu0 0.0
  %887 = vmatpush2.msra.mxu0 0.0
  %888 = vmatprep.subr.mxu0 0.0
  %889 = vmatpush2.msra.mxu0 0.0
  %890 = vmatprep.subr.mxu0 0.0
  %891 = vmatpush2.msra.mxu0 0.0
  %892 = vmatprep.subr.mxu0 0.0
  %893 = vmatpush2.msra.mxu0 0.0
  %894 = vmatprep.subr.mxu0 0.0
  %895 = vmatpush2.msra.mxu0 0.0
  %896 = vmatprep.subr.mxu0 0.0
  %897 = vmatpush2.msra.mxu0 0.0
  %898 = vmatprep.subr.mxu0 0.0
  %899 = vmatpush2.msra.mxu0 0.0
  %900 = vmatprep.mubr.f32.mxu0 0.0
  %901 = vmatmul.mubr.f32.gmra.mxu0 %v834
  %v902 = vpop.f32.mrf.mxu0
  %v903 = vadd.f32 %v826, %v902
  %v904 = vpop.f32.mrf.mxu0
  %v905 = vadd.f32 %v830, %v904
  %906 = vdwg.mxu0
  %v907 = vtanh.pop %v903
  %v908 = vmul.f32 %v907, 1.442695
  %v909 = vpow.pop %v908
  %v910 = vmul.f32 %v614, %v909
  %v911 = vadd.f32 %v910, %v905
  %v912 = vadd.f32 %v615, %v907
  %913 = vadd.xlane.f32.xlu0 %v912
  %v914 = vpop.xlane.xlu0 %913
  %v915 = vlaneseq
  %v916 = vand.u32 %v915, 127
  %vm917 = vcmp.eq.s32.totalorder %v916, 127
  %v918 = vsel %vm917, %v914, %v911
  %919 = vst [vmem:[%s7] sm:$0xff] %v918
  // Predicated region
  $region30: #{cinn_forward.1} parent=0 // pred_check
    _
  $region31: #{cinn_forward.1} parent=0 // pred_check_branch
    %921 = sbr.rel (0) target = $region33
  $region32: #{cinn_forward.1} parent=0 // pred_region
    _
  $region33: #{cinn_forward.1} parent=0 // pred_fallthru
    _
  // Predicated region
  $region34: #{cinn_forward.1} parent=0 // pred_check
    _
  $region35: #{cinn_forward.1} parent=0 // pred_check_branch
    %923 = sbr.rel (0) target = $region37
  $region36: #{cinn_forward.1} parent=0 // pred_region
    _
  $region37: #{cinn_forward.1} parent=0 // pred_fallthru
    _

</llo_original>
